<compile_context>
chip_gen: v5e
topology: v5e:2x2
jax: 0.10.0
libtpu: 0.0.40
codegen_flags: <defaults>
</compile_context>

<pallas_src>
import jax
import jax.numpy as jnp
from jax.experimental import pallas as pl
from jax.experimental.pallas import tpu as pltpu

# Logical (PyTorch) sizes.
NODE_FEATURES = 100          # num_components from PCA
HIDDEN_1 = 65                # inner_layer_size_1
HIDDEN_2 = 64                # inner_layer_size_2
OUT_DIM = 1

# Lane-padded sizes (multiples of 128).
SUBLANE = 8
F_P = 128
H1_P = 128
H2_P = 128
OUT_P = 128


def _round_up(x, m):
    return (x + m - 1) // m * m


def _pad2d(a, rows, cols):
    return jnp.pad(a, ((0, rows - a.shape[0]), (0, cols - a.shape[1])))


# ---------------------------------------------------------------------------
# Kernels
# ---------------------------------------------------------------------------
def transform_kernel(x_ref, w_ref, o_ref):
    """o = x @ w  (GCNConv1 feature transform, row-tiled)."""
    o_ref[...] = jnp.dot(
        x_ref[...], w_ref[...], preferred_element_type=jnp.float32
    ).astype(o_ref.dtype)


def agg_transform_kernel(adj_ref, t_ref, b_ref, w_ref, o_ref):
    """o = relu(adj_block @ T + b) @ W.

    Fuses GCNConv1 aggregation (+bias, dropout=identity, relu) with the
    GCNConv2 feature transform. MXU inputs bf16, accumulate/epilogue f32.
    """
    h = jnp.dot(adj_ref[...], t_ref[...], preferred_element_type=jnp.float32)
    h = jnp.maximum(h + b_ref[...], 0.0)
    o_ref[...] = jnp.dot(
        h.astype(jnp.bfloat16), w_ref[...], preferred_element_type=jnp.float32
    ).astype(o_ref.dtype)


def agg_head_kernel(adj_ref, t_ref, b_ref, wo_ref, bo_ref, o_ref):
    """o = relu(relu(adj_block @ T + b) @ Wo + bo)  (conv2 agg + Linear head)."""
    h = jnp.dot(adj_ref[...], t_ref[...], preferred_element_type=jnp.float32)
    h = jnp.maximum(h + b_ref[...], 0.0)
    o = jnp.dot(
        h.astype(jnp.bfloat16), wo_ref[...], preferred_element_type=jnp.float32
    ) + bo_ref[...]
    o_ref[...] = jnp.maximum(o, 0.0)


# ---------------------------------------------------------------------------
# JAX glue
# ---------------------------------------------------------------------------
def normalized_adjacency(edge_index, num_nodes):
    """Dense D^{-1/2}(A+I)D^{-1/2} from a (2, E) edge_index (src, dst)."""
    src = edge_index[0]
    dst = edge_index[1]
    a = jnp.zeros((num_nodes, num_nodes), jnp.float32)
    a = a.at[dst, src].set(1.0)                       # message flows src -> dst
    a = a + jnp.eye(num_nodes, dtype=jnp.float32)     # self-loops
    deg = a.sum(axis=1)
    dinv = jnp.where(deg > 0, 1.0 / jnp.sqrt(deg), 0.0)
    return dinv[:, None] * a * dinv[None, :]


def gcn_forward(x, edge_index, params, *, tm=256):
    n = x.shape[0]
    tm = min(tm, _round_up(n, SUBLANE))   # row-tile; re-derive smaller on v7x
    n_p = _round_up(n, tm)
    grid = (n_p // tm,)

    # Dense normalized adjacency, zero-padded, bf16 (dominant HBM traffic).
    adj = normalized_adjacency(edge_index, n)
    adj_p = _pad2d(adj, n_p, n_p).astype(jnp.bfloat16)
    x_p = _pad2d(x, n_p, F_P).astype(jnp.bfloat16)

    w1, b1, w2, b2, wo, bo = params
    w1_p = _pad2d(w1, F_P, H1_P).astype(jnp.bfloat16)
    w2_p = _pad2d(w2, H1_P, H2_P).astype(jnp.bfloat16)
    wo_p = _pad2d(wo, H2_P, OUT_P).astype(jnp.bfloat16)
    b1_p = _pad2d(b1.reshape(1, -1), 1, H1_P).astype(jnp.float32)
    b2_p = _pad2d(b2.reshape(1, -1), 1, H2_P).astype(jnp.float32)
    bo_p = _pad2d(bo.reshape(1, -1), 1, OUT_P).astype(jnp.float32)

    parallel = pltpu.CompilerParams(dimension_semantics=("parallel",))

    # --- Stage 1: T1 = X @ W1 (row-tiled) ------------------------------------
    t1 = pl.pallas_call(
        transform_kernel,
        out_shape=jax.ShapeDtypeStruct((n_p, H1_P), jnp.bfloat16),
        grid=grid,
        in_specs=[pl.BlockSpec((tm, F_P), lambda i: (i, 0)),
                  pl.BlockSpec((F_P, H1_P), lambda i: (0, 0))],
        out_specs=pl.BlockSpec((tm, H1_P), lambda i: (i, 0)),
        compiler_params=parallel,
        cost_estimate=pl.CostEstimate(
            flops=2 * n_p * F_P * H1_P,
            transcendentals=0,
            bytes_accessed=2 * (n_p * F_P + F_P * H1_P + n_p * H1_P)),
    )(x_p, w1_p)

    # --- Stage 2: T2 = relu(A @ T1 + b1) @ W2 (A streamed in row slabs) ------
    t2 = pl.pallas_call(
        agg_transform_kernel,
        out_shape=jax.ShapeDtypeStruct((n_p, H2_P), jnp.bfloat16),
        grid=grid,
        in_specs=[pl.BlockSpec((tm, n_p), lambda i: (i, 0)),      # adj rows
                  pl.BlockSpec((n_p, H1_P), lambda i: (0, 0)),    # T1 (resident)
                  pl.BlockSpec((1, H1_P), lambda i: (0, 0)),      # b1
                  pl.BlockSpec((H1_P, H2_P), lambda i: (0, 0))],  # W2
        out_specs=pl.BlockSpec((tm, H2_P), lambda i: (i, 0)),
        compiler_params=parallel,
        cost_estimate=pl.CostEstimate(
            flops=2 * n_p * n_p * H1_P + 2 * n_p * H1_P * H2_P,
            transcendentals=0,
            bytes_accessed=2 * (n_p * n_p + n_p * H1_P + H1_P * H2_P
                                + n_p * H2_P) + 4 * H1_P),
    )(adj_p, t1, b1_p, w2_p)

    # --- Stage 3: out = relu(relu(A @ T2 + b2) @ Wo + bo) --------------------
    out_p = pl.pallas_call(
        agg_head_kernel,
        out_shape=jax.ShapeDtypeStruct((n_p, OUT_P), jnp.float32),
        grid=grid,
        in_specs=[pl.BlockSpec((tm, n_p), lambda i: (i, 0)),      # adj rows
                  pl.BlockSpec((n_p, H2_P), lambda i: (0, 0)),    # T2 (resident)
                  pl.BlockSpec((1, H2_P), lambda i: (0, 0)),      # b2
                  pl.BlockSpec((H2_P, OUT_P), lambda i: (0, 0)),  # Wo
                  pl.BlockSpec((1, OUT_P), lambda i: (0, 0))],    # bo
        out_specs=pl.BlockSpec((tm, OUT_P), lambda i: (i, 0)),
        compiler_params=parallel,
        cost_estimate=pl.CostEstimate(
            flops=2 * n_p * n_p * H2_P + 2 * n_p * H2_P * OUT_P,
            transcendentals=0,
            bytes_accessed=2 * (n_p * n_p + n_p * H2_P + H2_P * OUT_P)
                           + 4 * (n_p * OUT_P + H2_P + OUT_P)),
    )(adj_p, t2, b2_p, wo_p, bo_p)

    # Slice padded rows/lanes back off.
    return out_p[:n, :OUT_DIM]


def init_params(key):
    k1, k2, k5, k6 = jax.random.split(key, 4)

    # GCNConv: glorot weights, zero bias; Linear: uniform(+/- 1/sqrt(fan_in)).
    def glorot(k, fan_in, fan_out):
        lim = jnp.sqrt(6.0 / (fan_in + fan_out))
        return jax.random.uniform(k, (fan_in, fan_out), jnp.float32, -lim, lim)

    w1 = glorot(k1, NODE_FEATURES, HIDDEN_1)
    b1 = jnp.zeros((HIDDEN_1,), jnp.float32)
    w2 = glorot(k2, HIDDEN_1, HIDDEN_2)
    b2 = jnp.zeros((HIDDEN_2,), jnp.float32)
    lim = 1.0 / jnp.sqrt(HIDDEN_2)
    wo = jax.random.uniform(k5, (HIDDEN_2, OUT_DIM), jnp.float32, -lim, lim)
    bo = jax.random.uniform(k6, (OUT_DIM,), jnp.float32, -lim, lim)
    return (w1, b1, w2, b2, wo, bo)


if __name__ == "__main__":
    key = jax.random.PRNGKey(0)
    kx, kp = jax.random.split(key)

    N = 16  # number of graph nodes (small)
    x = jax.random.normal(kx, (N, NODE_FEATURES), jnp.float32)

    # Simple bidirectional ring graph.
    idx = jnp.arange(N)
    src = jnp.concatenate([idx, (idx + 1) % N])
    dst = jnp.concatenate([(idx + 1) % N, idx])
    edge_index = jnp.stack([src, dst], axis=0)  # (2, 2N)

    params = init_params(kp)

    out = gcn_forward(x, edge_index, params)
    jax.block_until_ready(out)

    # Pure-JAX f32 reference (kernel uses bf16 MXU inputs -> loosened tol).
    adj = normalized_adjacency(edge_index, N)
    w1, b1, w2, b2, wo, bo = params
    h = jnp.maximum(adj @ (x @ w1) + b1[None, :], 0.0)
    h = jnp.maximum(adj @ (h @ w2) + b2[None, :], 0.0)
    ref = jnp.maximum(h @ wo + bo[None, :], 0.0)

    assert out.shape == (N, OUT_DIM)
    assert jnp.allclose(out, ref, atol=5e-2, rtol=5e-2), (
        float(jnp.max(jnp.abs(out - ref))))

    print("KERNEL_OK")
</pallas_src>

<mosaic_0001>
module attributes {stable_mosaic.version = 11 : i64} {
  func.func @transform_kernel(%arg0: i32, %arg1: memref<16x128xbf16, #tpu.memory_space<vmem>>, %arg2: memref<128x128xbf16, #tpu.memory_space<vmem>>, %arg3: memref<16x128xbf16, #tpu.memory_space<vmem>>) attributes {dimension_semantics = [#tpu.dimension_semantics<parallel>], iteration_bounds = array<i64: 1>, scalar_prefetch = 0 : i64, scratch_operands = 0 : i64, tpu.core_type = #tpu.core_type<tc>, window_params = [{transform_indices = @transform_0, window_bounds = array<i64: 16, 128>}, {pipeline_mode = #tpu.pipeline_mode<synchronous>, transform_indices = @transform_1, window_bounds = array<i64: 128, 128>}, {transform_indices = @transform_2, window_bounds = array<i64: 16, 128>}]} {
    %c0 = arith.constant 0 : index
    %c0_0 = arith.constant 0 : index
    %0 = vector.load %arg1[%c0, %c0_0] : memref<16x128xbf16, #tpu.memory_space<vmem>>, vector<16x128xbf16>
    %c0_1 = arith.constant 0 : index
    %c0_2 = arith.constant 0 : index
    %1 = vector.load %arg2[%c0_1, %c0_2] : memref<128x128xbf16, #tpu.memory_space<vmem>>, vector<128x128xbf16>
    %cst = arith.constant dense<0.000000e+00> : vector<16x128xf32>
    %2 = tpu.matmul %0, %1, %cst {dimension_numbers = #tpu.dot_dimension_numbers<[1], [0], [0], [1], [0, 0, 1, 1], [], []>} : vector<16x128xbf16>, vector<128x128xbf16>, vector<16x128xf32> -> vector<16x128xf32>
    %3 = arith.truncf %2 : vector<16x128xf32> to vector<16x128xbf16>
    %c0_3 = arith.constant 0 : index
    %c0_4 = arith.constant 0 : index
    %4 = vector.load %arg3[%c0_3, %c0_4] : memref<16x128xbf16, #tpu.memory_space<vmem>>, vector<16x128xbf16>
    tpu.vector_store %arg3[%c0_3, %c0_4], %3 {strides = array<i32>} : memref<16x128xbf16, #tpu.memory_space<vmem>>, vector<16x128xbf16>,
    return
  }
  func.func @transform_0(%arg0: i32) -> (i32, i32) {
    %c0_i32 = arith.constant 0 : i32
    %c0_i32_0 = arith.constant 0 : i32
    return %arg0, %c0_i32 : i32, i32
  }
  func.func @transform_1(%arg0: i32) -> (i32, i32) {
    %c0_i32 = arith.constant 0 : i32
    %c0_i32_0 = arith.constant 0 : i32
    %c0_i32_1 = arith.constant 0 : i32
    return %c0_i32, %c0_i32_0 : i32, i32
  }
  func.func @transform_2(%arg0: i32) -> (i32, i32) {
    %c0_i32 = arith.constant 0 : i32
    %c0_i32_0 = arith.constant 0 : i32
    return %arg0, %c0_i32 : i32, i32
  }
}

</mosaic_0001>

<llo_original>
// kernel: tpu_custom_call.1
$region0: #{tpu_custom_call.1}
  #allocation0 [shape = 'u32[]', space=smem, size = 0x4, offset = 0x4, fixed_abs, tag = 'smem constant byte address 0x4 - core index']
  #allocation1 [shape = 'u32[72,128]{1,0:T(1,128)}', space=vmem, size = 0x9000, scoped, tag = 'internal scratch']
  %s0 = inlined_call_operand.hbm [shape: bf16[16,128], index: 0, kind: input, shape index: {}]
  %s1 = inlined_call_operand.hbm [shape: bf16[128,128], index: 1, kind: input, shape index: {}]
  %s2 = inlined_call_operand.hbm [shape: bf16[16,128], index: 2, kind: output, shape index: {}]
  %s3 = sld [smem:[#allocation0]]
  $region26: #{tpu_custom_call.1} parent=0
    _
  %s5 = ssub.s32 1, %s3
  %s6 = scalar_select 0, %s5, %s3
  $region1: #{tpu_custom_call.1} parent=0
    #allocation2 [shape = 'u8[4096]{0}', space=vmem, size = 0x1000, scoped, tag = 'input window, operand 0, single buffered']
    #allocation3 [shape = 's32[1]{0}', space=sflag, size = 0x4, scoped, tag = 'scoped memory for tpu_custom_call.1']
    #allocation4 [shape = 's32[1]{0}', space=sflag, size = 0x4, scoped, tag = 'scoped memory for tpu_custom_call.1']
    #allocation5 [shape = 'u8[32768]{0}', space=vmem, size = 0x8000, scoped, tag = 'input window, operand 1, single buffered']
    #allocation6 [shape = 's32[1]{0}', space=sflag, size = 0x4, scoped, tag = 'scoped memory for tpu_custom_call.1']
    #allocation7 [shape = 'u8[4096]{0}', space=vmem, size = 0x1000, scoped, tag = 'output window, operand 0, single buffered']
    %7 = vsyncpa [#allocation3], 0
    %8 = vsyncpa [#allocation6], 0
    %9 = vsyncpa [#allocation4], 0
    // Predicated region
    $region2: #{tpu_custom_call.1} parent=1 // pred_check
      _
    $region3: #{tpu_custom_call.1} parent=1 // pred_check_branch
      %11 = sbr.rel (0) target = $region5
    $region4: #{tpu_custom_call.1} parent=1 // pred_region
      %13 = vsyncadd [#allocation3], 0
      %s14 = sshll.u32 %s0, 4
      %s15 = int_to_ptr.hbm [resolvable:$true] %s14
      %s16 = sshll.u32 [#allocation2], 4
      %s17 = int_to_ptr.vmem [resolvable:$true] %s16
      %22 = dma.hbm_to_vmem [thread:$0]  %s15, 128, %s17, [#allocation3], 64, 64, 4
    $region5: #{tpu_custom_call.1} parent=1 // pred_fallthru
      _
    // Predicated region
    $region6: #{tpu_custom_call.1} parent=1 // pred_check
      _
    $region7: #{tpu_custom_call.1} parent=1 // pred_check_branch
      %24 = sbr.rel (0) target = $region9
    $region8: #{tpu_custom_call.1} parent=1 // pred_region
      %26 = vsyncadd [#allocation6], 0
      %s27 = sshll.u32 %s1, 4
      %s28 = int_to_ptr.hbm [resolvable:$true] %s27
      %s29 = sshll.u32 [#allocation5], 4
      %s30 = int_to_ptr.vmem [resolvable:$true] %s29
      %35 = dma.hbm_to_vmem [thread:$0]  %s28, 1024, %s30, [#allocation6], 64, 64, 4
    $region9: #{tpu_custom_call.1} parent=1 // pred_fallthru
      _
    // Predicated region
    $region10: #{tpu_custom_call.1} parent=1 // pred_check
      _
    $region11: #{tpu_custom_call.1} parent=1 // pred_check_branch
      %37 = sbr.rel (0) target = $region13
    $region12: #{tpu_custom_call.1} parent=1 // pred_region
      %39 = dma.done [#allocation3], 128
    $region13: #{tpu_custom_call.1} parent=1 // pred_fallthru
      _
    // Predicated region
    $region14: #{tpu_custom_call.1} parent=1 // pred_check
      _
    $region15: #{tpu_custom_call.1} parent=1 // pred_check_branch
      %41 = sbr.rel (0) target = $region17
    $region16: #{tpu_custom_call.1} parent=1 // pred_region
      %43 = dma.done [#allocation6], 1024
    $region17: #{tpu_custom_call.1} parent=1 // pred_fallthru
      _
    %v44 = vld [vmem:[#allocation2] sm:$0xf]
    %v45 = vld [vmem:[#allocation2 + $0x4] sm:$0xf]
    %v46 = vld [vmem:[#allocation5] sm:$0xf]
    %v47 = vld [vmem:[#allocation5 + $0x4] sm:$0xf]
    %v48 = vld [vmem:[#allocation5 + $0x8] sm:$0xf]
    %v49 = vld [vmem:[#allocation5 + $0xc] sm:$0xf]
    %v50 = vld [vmem:[#allocation5 + $0x10] sm:$0xf]
    %v51 = vld [vmem:[#allocation5 + $0x14] sm:$0xf]
    %v52 = vld [vmem:[#allocation5 + $0x18] sm:$0xf]
    %v53 = vld [vmem:[#allocation5 + $0x1c] sm:$0xf]
    %v54 = vld [vmem:[#allocation5 + $0x20] sm:$0xf]
    %v55 = vld [vmem:[#allocation5 + $0x24] sm:$0xf]
    %v56 = vld [vmem:[#allocation5 + $0x28] sm:$0xf]
    %v57 = vld [vmem:[#allocation5 + $0x2c] sm:$0xf]
    %v58 = vld [vmem:[#allocation5 + $0x30] sm:$0xf]
    %v59 = vld [vmem:[#allocation5 + $0x34] sm:$0xf]
    %v60 = vld [vmem:[#allocation5 + $0x38] sm:$0xf]
    %v61 = vld [vmem:[#allocation5 + $0x3c] sm:$0xf]
    %v64 = vunpack.c.l.b16 %v44
    %v65 = vunpack.c.l.b16 %v45
    %v66 = vpack.c.b16 %v65, %v64
    %v84 = vunpack.c.l.b16 %v46
    %v85 = vunpack.c.l.b16 %v47
    %v86 = vunpack.c.l.b16 %v48
    %v87 = vunpack.c.l.b16 %v49
    %v88 = vunpack.c.l.b16 %v50
    %v89 = vunpack.c.l.b16 %v51
    %v90 = vunpack.c.l.b16 %v52
    %v91 = vunpack.c.l.b16 %v53
    %v92 = vunpack.c.l.b16 %v54
    %v93 = vunpack.c.l.b16 %v55
    %v94 = vunpack.c.l.b16 %v56
    %v95 = vunpack.c.l.b16 %v57
    %v96 = vunpack.c.l.b16 %v58
    %v97 = vunpack.c.l.b16 %v59
    %v98 = vunpack.c.l.b16 %v60
    %v99 = vunpack.c.l.b16 %v61
    %v100 = vpack.c.b16 %v85, %v84
    %v101 = vpack.c.b16 %v87, %v86
    %v102 = vpack.c.b16 %v89, %v88
    %v103 = vpack.c.b16 %v91, %v90
    %v104 = vpack.c.b16 %v93, %v92
    %v105 = vpack.c.b16 %v95, %v94
    %v106 = vpack.c.b16 %v97, %v96
    %v107 = vpack.c.b16 %v99, %v98
    %116 = vmatpush.bf16.msra.mxu0 %v107
    %117 = vmatpush.bf16.msra.mxu0 %v106
    %118 = vmatpush.bf16.msra.mxu0 %v105
    %119 = vmatpush.bf16.msra.mxu0 %v104
    %120 = vmatpush.bf16.msra.mxu0 %v103
    %121 = vmatpush.bf16.msra.mxu0 %v102
    %122 = vmatpush.bf16.msra.mxu0 %v101
    %123 = vmatpush.bf16.msra.mxu0 %v100
    %124 = vmatmul.bf16.gmra.mxu0 %v66
    %v125 = vpop.f32.mrf.mxu0
    %v126 = vadd.f32 0.0, %v125
    %v127 = vpop.f32.mrf.mxu0
    %v128 = vadd.f32 0.0, %v127
    %129 = vdwg.mxu0
    %v130 = vpack.c.bf16 %v126, %v126
    %v131 = vpack.c.bf16 %v128, %v128
    %132 = vst [vmem:[#allocation7] sm:$0xf] %v130
    %133 = vst [vmem:[#allocation7 + $0x4] sm:$0xf] %v131
    // Predicated region
    $region18: #{tpu_custom_call.1} parent=1 // pred_check
      _
    $region19: #{tpu_custom_call.1} parent=1 // pred_check_branch
      %135 = sbr.rel (0) target = $region21
    $region20: #{tpu_custom_call.1} parent=1 // pred_region
      %137 = vsyncadd [#allocation4], 0
      %s138 = sshll.u32 [#allocation7], 4
      %s139 = int_to_ptr.vmem [resolvable:$true] %s138
      %s140 = sshll.u32 %s2, 4
      %s141 = int_to_ptr.hbm [resolvable:$true] %s140
      %146 = dma.vmem_to_hbm [thread:$0]  %s139, 128, %s141, [#allocation4], 64, 64, 4
    $region21: #{tpu_custom_call.1} parent=1 // pred_fallthru
      _
    // Predicated region
    $region22: #{tpu_custom_call.1} parent=1 // pred_check
      _
    $region23: #{tpu_custom_call.1} parent=1 // pred_check_branch
      %148 = sbr.rel (0) target = $region25
    $region24: #{tpu_custom_call.1} parent=1 // pred_region
      %150 = dma.done [#allocation4], 128
    $region25: #{tpu_custom_call.1} parent=1 // pred_fallthru
      _
    %151 = vsyncpa [#allocation3], 1
    %152 = vsyncpa [#allocation6], 1
    %153 = vsyncpa [#allocation4], 1

</llo_original>
